<compile_context>
chip_gen: v6e
topology: v6e:2x2x1
jax: 0.10.0
libtpu: 0.0.40
codegen_flags: <defaults>
</compile_context>

<pallas_src>
import jax
import jax.numpy as jnp
from jax.experimental import pallas as pl
from jax.experimental.pallas import tpu as pltpu


def _rosenbrock_disk_kernel(theta_x_ref, theta_y_ref, psi_ref,
                            loss_ref, constraint_ref):
    # theta_*_ref / psi_ref : SMEM f32[1]
    # loss_ref, constraint_ref : VMEM f32[1, 1]
    tx = theta_x_ref[0]
    ty = theta_y_ref[0]
    psi = psi_ref[0]

    shape = (1, 1)

    # OpenInterval(-1.5, 1.5): -1.5 + 3*sigmoid(t) == 1.5*tanh(t/2)  (no divide)
    x = 1.5 * jnp.tanh(jnp.full(shape, tx, dtype=jnp.float32) * 0.5)
    y = 1.5 * jnp.tanh(jnp.full(shape, ty, dtype=jnp.float32) * 0.5)

    # PositiveReal(method='softplus'), numerically stable form.
    pv = jnp.full(shape, psi, dtype=jnp.float32)
    softplus_psi = jnp.maximum(pv, 0.0) + jnp.log(1.0 + jnp.exp(-jnp.abs(pv)))

    one_minus_x = 1.0 - x
    resid = y - x * x
    loss_ref[...] = one_minus_x * one_minus_x + 100.0 * resid * resid
    constraint_ref[...] = x * x + y * y - 2.0 + softplus_psi


@jax.jit
def rosenbrock_disk_forward(theta_x, theta_y, psi):
    """theta_x, theta_y, psi: shape (1,) params -> (loss, constraint) scalars."""
    theta_x = jnp.asarray(theta_x, jnp.float32).reshape((1,))
    theta_y = jnp.asarray(theta_y, jnp.float32).reshape((1,))
    psi = jnp.asarray(psi, jnp.float32).reshape((1,))

    loss, constraint = pl.pallas_call(
        _rosenbrock_disk_kernel,
        out_shape=(
            jax.ShapeDtypeStruct((1, 1), jnp.float32),
            jax.ShapeDtypeStruct((1, 1), jnp.float32),
        ),
        in_specs=[
            pl.BlockSpec(memory_space=pltpu.MemorySpace.SMEM),
            pl.BlockSpec(memory_space=pltpu.MemorySpace.SMEM),
            pl.BlockSpec(memory_space=pltpu.MemorySpace.SMEM),
        ],
        out_specs=(
            pl.BlockSpec(memory_space=pltpu.MemorySpace.VMEM),
            pl.BlockSpec(memory_space=pltpu.MemorySpace.VMEM),
        ),
    )(theta_x, theta_y, psi)
    return loss[0, 0], constraint[0, 0]


if __name__ == "__main__":
    key = jax.random.PRNGKey(0)
    k1, k2, k3 = jax.random.split(key, 3)

    # Deterministic "uniform(-1, 1)" init, mirroring the manifolds' __init__.
    theta_x = jax.random.uniform(k1, (1,), jnp.float32, minval=-1.0, maxval=1.0)
    theta_y = jax.random.uniform(k2, (1,), jnp.float32, minval=-1.0, maxval=1.0)
    psi = jax.random.uniform(k3, (1,), jnp.float32, minval=-1.0, maxval=1.0)

    loss, constraint = rosenbrock_disk_forward(theta_x, theta_y, psi)
    jax.block_until_ready((loss, constraint))

    # Pure-JAX reference check.
    x = -1.5 + 3.0 * jax.nn.sigmoid(theta_x[0])
    y = -1.5 + 3.0 * jax.nn.sigmoid(theta_y[0])
    ref_loss = (1.0 - x) ** 2 + 100.0 * (y - x * x) ** 2
    ref_cons = x * x + y * y - 2.0 + jax.nn.softplus(psi[0])

    assert jnp.allclose(loss, ref_loss, rtol=1e-4, atol=1e-5)
    assert jnp.allclose(constraint, ref_cons, rtol=1e-4, atol=1e-5)

    print("KERNEL_OK")
</pallas_src>

<mosaic_0001>
module attributes {stable_mosaic.version = 11 : i64} {
  func.func @_rosenbrock_disk_kernel(%arg0: memref<1xf32, #tpu.memory_space<smem>>, %arg1: memref<1xf32, #tpu.memory_space<smem>>, %arg2: memref<1xf32, #tpu.memory_space<smem>>, %arg3: memref<1x1xf32, #tpu.memory_space<vmem>>, %arg4: memref<1x1xf32, #tpu.memory_space<vmem>>) attributes {dimension_semantics = [], scalar_prefetch = 0 : i64, scratch_operands = 0 : i64, tpu.core_type = #tpu.core_type<tc>} {
    %c0 = arith.constant 0 : index
    %0 = memref.load %arg0[%c0] : memref<1xf32, #tpu.memory_space<smem>>
    %c0_0 = arith.constant 0 : index
    %1 = memref.load %arg1[%c0_0] : memref<1xf32, #tpu.memory_space<smem>>
    %c0_1 = arith.constant 0 : index
    %2 = memref.load %arg2[%c0_1] : memref<1xf32, #tpu.memory_space<smem>>
    %3 = vector.broadcast %0 : f32 to vector<1x1xf32>
    %cst = arith.constant 5.000000e-01 : f32
    %4 = vector.broadcast %cst : f32 to vector<1x1xf32>
    %5 = arith.mulf %3, %4 : vector<1x1xf32>
    %6 = math.tanh %5 : vector<1x1xf32>
    %cst_2 = arith.constant 1.500000e+00 : f32
    %7 = vector.broadcast %cst_2 : f32 to vector<1x1xf32>
    %8 = arith.mulf %7, %6 : vector<1x1xf32>
    %9 = vector.broadcast %1 : f32 to vector<1x1xf32>
    %cst_3 = arith.constant 5.000000e-01 : f32
    %10 = vector.broadcast %cst_3 : f32 to vector<1x1xf32>
    %11 = arith.mulf %9, %10 : vector<1x1xf32>
    %12 = math.tanh %11 : vector<1x1xf32>
    %cst_4 = arith.constant 1.500000e+00 : f32
    %13 = vector.broadcast %cst_4 : f32 to vector<1x1xf32>
    %14 = arith.mulf %13, %12 : vector<1x1xf32>
    %15 = vector.broadcast %2 : f32 to vector<1x1xf32>
    %cst_5 = arith.constant 0.000000e+00 : f32
    %16 = vector.broadcast %cst_5 : f32 to vector<1x1xf32>
    %17 = arith.maximumf %15, %16 : vector<1x1xf32>
    %18 = math.absf %15 : vector<1x1xf32>
    %cst_6 = arith.constant 0.000000e+00 : f32
    %19 = vector.broadcast %cst_6 : f32 to vector<1x1xf32>
    %20 = arith.subf %19, %18 : vector<1x1xf32>
    %21 = math.exp %20 : vector<1x1xf32>
    %cst_7 = arith.constant 1.000000e+00 : f32
    %22 = vector.broadcast %cst_7 : f32 to vector<1x1xf32>
    %23 = arith.addf %22, %21 : vector<1x1xf32>
    %24 = math.log %23 : vector<1x1xf32>
    %25 = arith.addf %17, %24 : vector<1x1xf32>
    %cst_8 = arith.constant 1.000000e+00 : f32
    %26 = vector.broadcast %cst_8 : f32 to vector<1x1xf32>
    %27 = arith.subf %26, %8 : vector<1x1xf32>
    %28 = arith.mulf %8, %8 : vector<1x1xf32>
    %29 = arith.subf %14, %28 : vector<1x1xf32>
    %30 = arith.mulf %27, %27 : vector<1x1xf32>
    %cst_9 = arith.constant 1.000000e+02 : f32
    %31 = vector.broadcast %cst_9 : f32 to vector<1x1xf32>
    %32 = arith.mulf %31, %29 : vector<1x1xf32>
    %33 = arith.mulf %32, %29 : vector<1x1xf32>
    %34 = arith.addf %30, %33 : vector<1x1xf32>
    %c0_10 = arith.constant 0 : index
    %c0_11 = arith.constant 0 : index
    %35 = vector.load %arg3[%c0_10, %c0_11] : memref<1x1xf32, #tpu.memory_space<vmem>>, vector<1x1xf32>
    tpu.vector_store %arg3[%c0_10, %c0_11], %34 {strides = array<i32>} : memref<1x1xf32, #tpu.memory_space<vmem>>, vector<1x1xf32>,
    %36 = arith.mulf %8, %8 : vector<1x1xf32>
    %37 = arith.mulf %14, %14 : vector<1x1xf32>
    %38 = arith.addf %36, %37 : vector<1x1xf32>
    %cst_12 = arith.constant 2.000000e+00 : f32
    %39 = vector.broadcast %cst_12 : f32 to vector<1x1xf32>
    %40 = arith.subf %38, %39 : vector<1x1xf32>
    %41 = arith.addf %40, %25 : vector<1x1xf32>
    %c0_13 = arith.constant 0 : index
    %c0_14 = arith.constant 0 : index
    %42 = vector.load %arg4[%c0_13, %c0_14] : memref<1x1xf32, #tpu.memory_space<vmem>>, vector<1x1xf32>
    tpu.vector_store %arg4[%c0_13, %c0_14], %41 {strides = array<i32>} : memref<1x1xf32, #tpu.memory_space<vmem>>, vector<1x1xf32>,
    return
  }
}

</mosaic_0001>

<llo_original>
// kernel: rosenbrock_disk_forward.1
$region0: #{rosenbrock_disk_forward.1}
  #allocation0 [shape = 'u32[]', space=smem, size = 0x4, offset = 0x4, fixed_abs, tag = 'smem constant byte address 0x4 - core index']
  #allocation1 [shape = 'u32[144,128]{1,0:T(1,128)}', space=vmem, size = 0x12000, scoped, tag = 'internal scratch']
  #allocation2 [shape = 'f32[1]{0:T(128)S(6)}', space=smem, size = 0x200, scoped, tag = 'scoped memory for rosenbrock_disk_forward.1']
  #allocation3 [shape = 'f32[1]{0:T(128)S(6)}', space=smem, size = 0x200, scoped, tag = 'scoped memory for rosenbrock_disk_forward.1']
  #allocation4 [shape = 'f32[1]{0:T(128)S(6)}', space=smem, size = 0x200, scoped, tag = 'scoped memory for rosenbrock_disk_forward.1']
  %s0 = inlined_call_operand.<no memory space> [shape: f32[1], index: 0, kind: input, shape index: {}]
  %s1 = inlined_call_operand.<no memory space> [shape: f32[1], index: 1, kind: input, shape index: {}]
  %s2 = inlined_call_operand.<no memory space> [shape: f32[1], index: 2, kind: input, shape index: {}]
  %s3 = inlined_call_operand.hbm [shape: f32[1,1], index: 3, kind: output, shape index: {0}]
  %s4 = inlined_call_operand.hbm [shape: f32[1,1], index: 4, kind: output, shape index: {1}]
  %5 = xla_tuple %s3, %s4
  %s6 = sld [smem:[#allocation0]]
  $region30: #{rosenbrock_disk_forward.1} parent=0
    _
  %s8 = ssub.s32 1, %s6
  %s9 = scalar_select 0, %s8, %s6
  %10 = sst [smem:[#allocation2]] %s0
  %11 = sst [smem:[#allocation3]] %s1
  %12 = sst [smem:[#allocation4]] %s2
  $region1: #{rosenbrock_disk_forward.1} parent=0
    #allocation5 [shape = 'u8[512]{0}', space=vmem, size = 0x400, scoped, tag = 'output window, operand 0, single buffered']
    #allocation6 [shape = 's32[1]{0}', space=sflag, size = 0x4, scoped, tag = 'scoped memory for rosenbrock_disk_forward.1']
    #allocation7 [shape = 'u8[512]{0}', space=vmem, size = 0x400, scoped, tag = 'output window, operand 1, single buffered']
    #allocation8 [shape = 's32[1]{0}', space=sflag, size = 0x4, scoped, tag = 'scoped memory for rosenbrock_disk_forward.1']
    %13 = vsyncpa [#allocation6], 0
    %14 = vsyncpa [#allocation8], 0
    // Predicated region
    $region2: #{rosenbrock_disk_forward.1} parent=1 // pred_check
      _
    $region3: #{rosenbrock_disk_forward.1} parent=1 // pred_check_branch
      %16 = sbr.rel (0) target = $region5
    $region4: #{rosenbrock_disk_forward.1} parent=1 // pred_region
      _
    $region5: #{rosenbrock_disk_forward.1} parent=1 // pred_fallthru
      _
    // Predicated region
    $region6: #{rosenbrock_disk_forward.1} parent=1 // pred_check
      _
    $region7: #{rosenbrock_disk_forward.1} parent=1 // pred_check_branch
      %18 = sbr.rel (0) target = $region9
    $region8: #{rosenbrock_disk_forward.1} parent=1 // pred_region
      _
    $region9: #{rosenbrock_disk_forward.1} parent=1 // pred_fallthru
      _
    // Predicated region
    $region10: #{rosenbrock_disk_forward.1} parent=1 // pred_check
      _
    $region11: #{rosenbrock_disk_forward.1} parent=1 // pred_check_branch
      %20 = sbr.rel (0) target = $region13
    $region12: #{rosenbrock_disk_forward.1} parent=1 // pred_region
      _
    $region13: #{rosenbrock_disk_forward.1} parent=1 // pred_fallthru
      _
    %s21 = sld [smem:[#allocation2]]
    %s22 = sld [smem:[#allocation3]]
    %s23 = sld [smem:[#allocation4]]
    %v24 = vstv %s21
    %v25 = vmul.f32 %v24, 0.5
    %v26 = vtanh.pop %v25
    %v27 = vmul.f32 %v26, 1.5
    %v28 = vstv %s22
    %v29 = vmul.f32 %v28, 0.5
    %v30 = vtanh.pop %v29
    %v31 = vmul.f32 %v30, 1.5
    %v32 = vstv %s23
    %v33 = vmax.f32 %v32, 0.0
    %v34 = vand.u32 2147483647, %v32
    %v35 = vsub.f32 0.0, %v34
    %v36 = vmul.f32 %v35, 1.442695
    %v37 = vpow.pop %v36
    %v38 = vadd.f32 %v37, 1.0
    %v39 = vlog2.pop %v38
    %v40 = vmul.f32 %v39, 0.6931472
    %v41 = vadd.f32 %v33, %v40
    %v42 = vsub.f32 1.0, %v27
    %v43 = vmul.f32 %v27, %v27
    %v44 = vsub.f32 %v31, %v43
    %v45 = vmul.f32 %v42, %v42
    %v46 = vmul.f32 %v44, 100.0
    %v47 = vmul.f32 %v46, %v44
    %v48 = vadd.f32 %v45, %v47
    %vm49 = vcmask 0
    %50 = vst.msk [vmem:[#allocation5] sm:$0x1] %vm49, %v48
    %v51 = vmul.f32 %v31, %v31
    %v52 = vadd.f32 %v43, %v51
    %v53 = vsub.f32 %v52, 2.0
    %v54 = vadd.f32 %v53, %v41
    %55 = vst.msk [vmem:[#allocation7] sm:$0x1] %vm49, %v54
    // Predicated region
    $region14: #{rosenbrock_disk_forward.1} parent=1 // pred_check
      _
    $region15: #{rosenbrock_disk_forward.1} parent=1 // pred_check_branch
      %57 = sbr.rel (0) target = $region17
    $region16: #{rosenbrock_disk_forward.1} parent=1 // pred_region
      %s59 = ssub.s32 16, 16
      %60 = vsyncadd [#allocation6], %s59
      %s62 = sshll.u32 [#allocation5], 4
      %s63 = int_to_ptr.vmem [resolvable:$true] %s62
      %65 = dma.vmem_to_hbm [thread:$0]  %s63, 16, %s3, [#allocation6]
    $region17: #{rosenbrock_disk_forward.1} parent=1 // pred_fallthru
      _
    // Predicated region
    $region18: #{rosenbrock_disk_forward.1} parent=1 // pred_check
      _
    $region19: #{rosenbrock_disk_forward.1} parent=1 // pred_check_branch
      %67 = sbr.rel (0) target = $region21
    $region20: #{rosenbrock_disk_forward.1} parent=1 // pred_region
      %s69 = ssub.s32 16, 16
      %70 = vsyncadd [#allocation8], %s69
      %s72 = sshll.u32 [#allocation7], 4
      %s73 = int_to_ptr.vmem [resolvable:$true] %s72
      %75 = dma.vmem_to_hbm [thread:$0]  %s73, 16, %s4, [#allocation8]
    $region21: #{rosenbrock_disk_forward.1} parent=1 // pred_fallthru
      _
    // Predicated region
    $region22: #{rosenbrock_disk_forward.1} parent=1 // pred_check
      _
    $region23: #{rosenbrock_disk_forward.1} parent=1 // pred_check_branch
      %77 = sbr.rel (0) target = $region25
    $region24: #{rosenbrock_disk_forward.1} parent=1 // pred_region
      %78 = dma.done [#allocation6], 16
    $region25: #{rosenbrock_disk_forward.1} parent=1 // pred_fallthru
      _
    // Predicated region
    $region26: #{rosenbrock_disk_forward.1} parent=1 // pred_check
      _
    $region27: #{rosenbrock_disk_forward.1} parent=1 // pred_check_branch
      %80 = sbr.rel (0) target = $region29
    $region28: #{rosenbrock_disk_forward.1} parent=1 // pred_region
      %81 = dma.done [#allocation8], 16
    $region29: #{rosenbrock_disk_forward.1} parent=1 // pred_fallthru
      _
    %82 = vsyncpa [#allocation6], 1
    %83 = vsyncpa [#allocation8], 1

</llo_original>
